<compile_context>
chip_gen: v7x
topology: tpu7x:2x2x1
jax: 0.10.0
libtpu: 0.0.40
codegen_flags: <defaults>
</compile_context>

<pallas_src>
import functools

import jax
import jax.numpy as jnp
import numpy as np
from jax.experimental import pallas as pl
from jax.experimental.pallas import tpu as pltpu

# ----------------------------- model dims (small) ---------------------------
B, T, H = 2, 32, 32          # batch, time frames, hidden size (toy; real H=1024, T~3000)
VOCAB = 256                  # CTC lm_head output size (toy; real 32768 — multiple of 128)
NUM_AGE, NUM_GENDER, NUM_ACCENT = 8, 4, 8
AGE_MID, GEN_MID, ACC_MID = 128, 64, 128     # same head widths as the torch module

LANE = 128
HEAD_MID = AGE_MID + GEN_MID + ACC_MID       # 320  (concatenated first layer)
HEAD_OUT = NUM_AGE + NUM_GENDER + NUM_ACCENT  # 20 real head logits
HEAD_OUT_PAD = LANE                           # lane-dense packed head output

# --------------------------------- tiling -----------------------------------
# Toy tiles below.  At real wav2vec2 dims (B*T ~ 6000 rows, H=1024, VOCAB=32768):
#   * TM_ROWS >= 256 and TN_VOCAB a multiple of 256 on v6e/v7x (2x256 MXU);
#     multiples of 128 on v5e (4x128 MXU).
#   * v7x (64 MiB physical / ~32 MiB scoped VMEM): keep the double-buffered bf16
#     (TM,H) + (H,TN) tiles plus the (TM,TN) output tile well under the limit,
#     e.g. TM=512, TN=2048.  Do NOT plan on a VMEM-resident lm_w (bf16 lm_w = 64 MiB).
#   * v6e/v5e (128 MiB VMEM): optionally hold the whole bf16 lm_w resident
#     (constant row index_map + pltpu.CompilerParams(vmem_limit_bytes=...)) and only
#     stream hidden row tiles.
TM_ROWS = 16      # row tile of the flattened (B*T, H) hidden; multiple of 16 (bf16 pack)
TN_VOCAB = 128    # vocab tile (lane-dense)
TT_TIME = 16      # time tile for the pooled-mean accumulation

CTC_OUT_DTYPE = jnp.bfloat16   # halves the dominant logits writeback at real dims


# --------------------------- kernel 1: CTC lm_head ---------------------------
def ctc_kernel(hid_ref, lmw_ref, lmb_ref, out_ref):
    # (TM, H) bf16 @ (H, TN) bf16 -> f32 accumulate on the MXU, then bias + cast.
    acc = jnp.dot(hid_ref[...], lmw_ref[...], preferred_element_type=jnp.float32)
    out_ref[...] = (acc + lmb_ref[...]).astype(out_ref.dtype)


# --------------------- kernel 2: mean pool + fused heads ---------------------
def heads_kernel(inv_t, hid_ref, hw1_ref, hb1_ref, hw2_ref, hb2_ref,
                 out_ref, psum_ref):
    t = pl.program_id(0)

    @pl.when(t == 0)
    def _():
        psum_ref[...] = jnp.zeros_like(psum_ref)

    # f32 accumulation of the time sum (a bf16 sum over T~3000 would lose precision).
    psum_ref[...] += jnp.sum(hid_ref[...].astype(jnp.float32), axis=1)   # (B, H)

    @pl.when(t == pl.num_programs(0) - 1)
    def _():
        pooled = (psum_ref[...] * inv_t).astype(jnp.bfloat16)            # (B, H)
        z = jnp.dot(pooled, hw1_ref[...],
                    preferred_element_type=jnp.float32) + hb1_ref[...]    # (B, 320)
        z = jnp.maximum(z, 0.0).astype(jnp.bfloat16)                      # ReLU
        heads = jnp.dot(z, hw2_ref[...],
                        preferred_element_type=jnp.float32) + hb2_ref[...]  # (B, 128)
        out_ref[...] = heads.astype(out_ref.dtype)    # [age | gender | accent | 0...]


# --------------------------------- wrapper -----------------------------------
def multitask_forward(hidden, packed):
    """hidden: (B, T, H) (cast to bf16 internally). packed: output of pack_params().
    Returns dict of logits like the torch module."""
    b, t, h = hidden.shape
    hidden = hidden.astype(jnp.bfloat16)
    rows = b * t
    assert rows % TM_ROWS == 0 and VOCAB % TN_VOCAB == 0 and t % TT_TIME == 0

    # Free contiguous reshape (last dim intact) — no data movement.
    hidden2 = hidden.reshape(rows, h)

    # --- CTC projection: (rows, H) @ (H, VOCAB), gridded over (row, vocab) tiles.
    ctc_flops = 2 * rows * h * VOCAB
    ctc_bytes = (2 * (hidden2.size + packed["lm_w"].size + rows * VOCAB)
                 + 4 * packed["lm_b"].size)
    ctc = pl.pallas_call(
        ctc_kernel,
        out_shape=jax.ShapeDtypeStruct((rows, VOCAB), CTC_OUT_DTYPE),
        grid_spec=pltpu.PrefetchScalarGridSpec(
            num_scalar_prefetch=0,
            grid=(rows // TM_ROWS, VOCAB // TN_VOCAB),
            in_specs=[
                pl.BlockSpec((TM_ROWS, h), lambda i, j: (i, 0)),
                pl.BlockSpec((h, TN_VOCAB), lambda i, j: (0, j)),
                pl.BlockSpec((1, TN_VOCAB), lambda i, j: (0, j)),
            ],
            out_specs=pl.BlockSpec((TM_ROWS, TN_VOCAB), lambda i, j: (i, j)),
        ),
        compiler_params=pltpu.CompilerParams(
            dimension_semantics=("parallel", "parallel")),
        cost_estimate=pl.CostEstimate(flops=ctc_flops, transcendentals=0,
                                      bytes_accessed=ctc_bytes),
    )(hidden2, packed["lm_w"], packed["lm_b"])

    # --- mean pool + fused MLP heads (separate tiny call: runs exactly once,
    # not once per vocab tile).  Time-tiled with f32 pooled-sum scratch.
    heads_flops = 2 * b * h * HEAD_MID + 2 * b * HEAD_MID * HEAD_OUT_PAD
    heads_bytes = (2 * (hidden.size + packed["head_w1"].size + packed["head_w2"].size)
                   + 4 * (packed["head_b1"].size + packed["head_b2"].size
                          + b * HEAD_OUT_PAD))
    head_pad = pl.pallas_call(
        functools.partial(heads_kernel, 1.0 / float(t)),
        out_shape=jax.ShapeDtypeStruct((b, HEAD_OUT_PAD), jnp.float32),
        grid_spec=pltpu.PrefetchScalarGridSpec(
            num_scalar_prefetch=0,
            grid=(t // TT_TIME,),
            in_specs=[
                pl.BlockSpec((b, TT_TIME, h), lambda k: (0, k, 0)),
                pl.BlockSpec((h, HEAD_MID), lambda k: (0, 0)),
                pl.BlockSpec((1, HEAD_MID), lambda k: (0, 0)),
                pl.BlockSpec((HEAD_MID, HEAD_OUT_PAD), lambda k: (0, 0)),
                pl.BlockSpec((1, HEAD_OUT_PAD), lambda k: (0, 0)),
            ],
            out_specs=pl.BlockSpec((b, HEAD_OUT_PAD), lambda k: (0, 0)),
            scratch_shapes=[pltpu.VMEM((b, h), jnp.float32)],
        ),
        compiler_params=pltpu.CompilerParams(dimension_semantics=("arbitrary",)),
        cost_estimate=pl.CostEstimate(flops=heads_flops, transcendentals=0,
                                      bytes_accessed=heads_bytes),
    )(hidden, packed["head_w1"], packed["head_b1"],
      packed["head_w2"], packed["head_b2"])

    return {
        "logits": ctc.reshape(b, t, VOCAB),   # free reshape, final shape/dtype
        "age_logits": head_pad[:, :NUM_AGE],
        "gender_logits": head_pad[:, NUM_AGE:NUM_AGE + NUM_GENDER],
        "accent_logits": head_pad[:, NUM_AGE + NUM_GENDER:HEAD_OUT],
    }


# ----------------------- deterministic parameter init ------------------------
def init_params(key):
    def lin(k, fan_in, fan_out):
        kw, kb = jax.random.split(k)
        scale = 1.0 / np.sqrt(fan_in)
        w = jax.random.uniform(kw, (fan_in, fan_out), jnp.float32, -scale, scale)
        b = jax.random.uniform(kb, (1, fan_out), jnp.float32, -scale, scale)
        return w, b

    keys = jax.random.split(key, 7)
    p = {}
    p["age_w1"], p["age_b1"] = lin(keys[0], H, AGE_MID)
    p["age_w2"], p["age_b2"] = lin(keys[1], AGE_MID, NUM_AGE)
    p["gen_w1"], p["gen_b1"] = lin(keys[2], H, GEN_MID)
    p["gen_w2"], p["gen_b2"] = lin(keys[3], GEN_MID, NUM_GENDER)
    p["acc_w1"], p["acc_b1"] = lin(keys[4], H, ACC_MID)
    p["acc_w2"], p["acc_b2"] = lin(keys[5], ACC_MID, NUM_ACCENT)
    p["lm_w"], p["lm_b"] = lin(keys[6], H, VOCAB)
    return p


def pack_params(p):
    """Fuse per-head weights into kernel-friendly packed arrays (done once).
    Weight matrices are stored bf16 (MXU-native); biases stay f32."""
    bf = jnp.bfloat16
    # First layer: concat along the output dim -> (H, 320) bf16, (1, 320) f32.
    head_w1 = jnp.concatenate([p["age_w1"], p["gen_w1"], p["acc_w1"]], axis=1).astype(bf)
    head_b1 = jnp.concatenate([p["age_b1"], p["gen_b1"], p["acc_b1"]], axis=1)

    # Second layer: block-diagonal (320, 128) lane-dense; extra columns zero, so one
    # matmul reproduces the three independent head projections exactly.
    w2 = jnp.zeros((HEAD_MID, HEAD_OUT_PAD), jnp.float32)
    w2 = w2.at[:AGE_MID, :NUM_AGE].set(p["age_w2"])
    w2 = w2.at[AGE_MID:AGE_MID + GEN_MID,
               NUM_AGE:NUM_AGE + NUM_GENDER].set(p["gen_w2"])
    w2 = w2.at[AGE_MID + GEN_MID:,
               NUM_AGE + NUM_GENDER:HEAD_OUT].set(p["acc_w2"])

    b2 = jnp.zeros((1, HEAD_OUT_PAD), jnp.float32)
    b2 = b2.at[:, :NUM_AGE].set(p["age_b2"])
    b2 = b2.at[:, NUM_AGE:NUM_AGE + NUM_GENDER].set(p["gen_b2"])
    b2 = b2.at[:, NUM_AGE + NUM_GENDER:HEAD_OUT].set(p["acc_b2"])

    return {"head_w1": head_w1, "head_b1": head_b1,
            "head_w2": w2.astype(bf), "head_b2": b2,
            "lm_w": p["lm_w"].astype(bf), "lm_b": p["lm_b"]}


# ----------------------------- pure-JAX reference ----------------------------
def quantize_weights(p):
    """bf16-quantized (then f32) copies of the weight matrices, matching what the
    kernel consumes; biases untouched."""
    return {k: (v.astype(jnp.bfloat16).astype(jnp.float32) if "_w" in k else v)
            for k, v in p.items()}


def reference_forward(hidden_bf16, pq):
    hi = jax.lax.Precision.HIGHEST
    h = hidden_bf16.astype(jnp.float32)
    pooled = h.mean(axis=1)

    def mlp(x, w1, b1, w2, b2):
        xb = x.astype(jnp.bfloat16).astype(jnp.float32)     # mirror kernel casts
        z = jnp.dot(xb, w1, precision=hi) + b1
        z = jnp.maximum(z, 0.0).astype(jnp.bfloat16).astype(jnp.float32)
        return jnp.dot(z, w2, precision=hi) + b2

    return {
        "logits": jnp.dot(h, pq["lm_w"], precision=hi) + pq["lm_b"],
        "age_logits": mlp(pooled, pq["age_w1"], pq["age_b1"], pq["age_w2"], pq["age_b2"]),
        "gender_logits": mlp(pooled, pq["gen_w1"], pq["gen_b1"], pq["gen_w2"], pq["gen_b2"]),
        "accent_logits": mlp(pooled, pq["acc_w1"], pq["acc_b1"], pq["acc_w2"], pq["acc_b2"]),
    }


if __name__ == "__main__":
    key = jax.random.PRNGKey(0)
    k_hid, k_par = jax.random.split(key)
    # hidden_states = output of self.asr.wav2vec2(input_values).last_hidden_state
    hidden_f32 = jax.random.normal(k_hid, (B, T, H), dtype=jnp.float32)
    hidden = hidden_f32.astype(jnp.bfloat16)    # bf16 activations fed to the kernels
    params = init_params(k_par)
    packed = pack_params(params)

    out = jax.block_until_ready(multitask_forward(hidden, packed))

    ref = reference_forward(hidden, quantize_weights(params))
    # CTC logits are emitted in bf16 -> tolerance covers output rounding only.
    np.testing.assert_allclose(np.asarray(out["logits"].astype(jnp.float32)),
                               np.asarray(ref["logits"]), rtol=2e-2, atol=2e-2)
    for name in ("age_logits", "gender_logits", "accent_logits"):
        np.testing.assert_allclose(np.asarray(out[name]), np.asarray(ref[name]),
                                   rtol=2e-3, atol=2e-3)

    print("KERNEL_OK")
</pallas_src>

<mosaic_0001>
module attributes {stable_mosaic.version = 11 : i64} {
  func.func @ctc_kernel(%arg0: i32, %arg1: i32, %arg2: memref<16x32xbf16, #tpu.memory_space<vmem>>, %arg3: memref<32x128xbf16, #tpu.memory_space<vmem>>, %arg4: memref<1x128xf32, #tpu.memory_space<vmem>>, %arg5: memref<16x128xbf16, #tpu.memory_space<vmem>>) attributes {dimension_semantics = [#tpu.dimension_semantics<parallel>, #tpu.dimension_semantics<parallel>], iteration_bounds = array<i64: 4, 2>, scalar_prefetch = 0 : i64, scratch_operands = 0 : i64, tpu.core_type = #tpu.core_type<tc>, window_params = [{transform_indices = @transform_0, window_bounds = array<i64: 16, 32>}, {transform_indices = @transform_1, window_bounds = array<i64: 32, 128>}, {transform_indices = @transform_2, window_bounds = array<i64: 1, 128>}, {transform_indices = @transform_3, window_bounds = array<i64: 16, 128>}]} {
    %c0 = arith.constant 0 : index
    %c0_0 = arith.constant 0 : index
    %0 = vector.load %arg2[%c0, %c0_0] : memref<16x32xbf16, #tpu.memory_space<vmem>>, vector<16x32xbf16>
    %c0_1 = arith.constant 0 : index
    %c0_2 = arith.constant 0 : index
    %1 = vector.load %arg3[%c0_1, %c0_2] : memref<32x128xbf16, #tpu.memory_space<vmem>>, vector<32x128xbf16>
    %cst = arith.constant dense<0.000000e+00> : vector<16x128xf32>
    %2 = tpu.matmul %0, %1, %cst {dimension_numbers = #tpu.dot_dimension_numbers<[1], [0], [0], [1], [0, 0, 1, 1], [], []>} : vector<16x32xbf16>, vector<32x128xbf16>, vector<16x128xf32> -> vector<16x128xf32>
    %c0_3 = arith.constant 0 : index
    %c0_4 = arith.constant 0 : index
    %3 = vector.load %arg4[%c0_3, %c0_4] : memref<1x128xf32, #tpu.memory_space<vmem>>, vector<1x128xf32>
    %4 = vector.broadcast %3 : vector<1x128xf32> to vector<16x128xf32>
    %5 = arith.addf %2, %4 : vector<16x128xf32>
    %6 = arith.truncf %5 : vector<16x128xf32> to vector<16x128xbf16>
    %c0_5 = arith.constant 0 : index
    %c0_6 = arith.constant 0 : index
    %7 = vector.load %arg5[%c0_5, %c0_6] : memref<16x128xbf16, #tpu.memory_space<vmem>>, vector<16x128xbf16>
    tpu.vector_store %arg5[%c0_5, %c0_6], %6 {strides = array<i32>} : memref<16x128xbf16, #tpu.memory_space<vmem>>, vector<16x128xbf16>,
    return
  }
  func.func @transform_0(%arg0: i32, %arg1: i32) -> (i32, i32) {
    %c0_i32 = arith.constant 0 : i32
    %c0_i32_0 = arith.constant 0 : i32
    return %arg0, %c0_i32 : i32, i32
  }
  func.func @transform_1(%arg0: i32, %arg1: i32) -> (i32, i32) {
    %c0_i32 = arith.constant 0 : i32
    %c0_i32_0 = arith.constant 0 : i32
    return %c0_i32, %arg1 : i32, i32
  }
  func.func @transform_2(%arg0: i32, %arg1: i32) -> (i32, i32) {
    %c0_i32 = arith.constant 0 : i32
    %c0_i32_0 = arith.constant 0 : i32
    return %c0_i32, %arg1 : i32, i32
  }
  func.func @transform_3(%arg0: i32, %arg1: i32) -> (i32, i32) {
    %c0_i32 = arith.constant 0 : i32
    return %arg0, %arg1 : i32, i32
  }
}

</mosaic_0001>

<llo_original>
// kernel: tpu_custom_call.1
$region0: #{tpu_custom_call.1}
  #allocation0 [shape = 'u32[]', space=smem, size = 0x4, offset = 0x4, fixed_abs, tag = 'smem constant byte address 0x4 - core index']
  #allocation1 [shape = 'u32[144,128]{1,0:T(1,128)}', space=vmem, size = 0x12000, scoped, tag = 'internal scratch']
  %s0 = inlined_call_operand.vmem [shape: bf16[64,32], index: 0, kind: input, shape index: {}]
  %s1 = inlined_call_operand.vmem [shape: bf16[32,256], index: 1, kind: input, shape index: {}]
  %s2 = inlined_call_operand.vmem [shape: f32[1,256], index: 2, kind: input, shape index: {}]
  %s3 = inlined_call_operand.hbm [shape: bf16[64,256], index: 3, kind: output, shape index: {}]
  %s4 = sld [smem:[#allocation0]]
  $region86: #{tpu_custom_call.1} parent=0
    _
  %s6 = ssub.s32 1, %s4
  %s7 = scalar_select 0, %s6, %s4
  $region1: #{tpu_custom_call.1} parent=0
    #allocation2 [shape = 'u8[16384]{0}', space=vmem, size = 0x4000, scoped, tag = 'input window, operand 1']
    #allocation3 [shape = 'u8[8192]{0}', space=vmem, size = 0x2000, scoped, tag = 'output window, operand 0']
    #allocation4 [shape = 's32[2]{0}', space=sflag, size = 0x8, scoped, tag = 'scoped memory for tpu_custom_call.1']
    %8 = vsyncpa [#allocation4], 0
    %s9 = scalar_lea.sflag [#allocation4], 1
    %10 = vsyncpa %s9, 0
    loop: start=0, step=1, limit=10
    $region2: #{tpu_custom_call.1} parent=1 // loop_pre_header
      _
    $region3: #{tpu_custom_call.1} parent=1 // loop_header
      %s12 = sphi 0, %s16
      %p13 = scmp.ge.s32.totalorder %s12, 10
      %s19 = sphi 0, %s31
      %s20 = sphi 0, %s27
      %s21 = sphi 0, %s19
      %s22 = sphi 0, %s20
      %s23 = sphi 0, %s21
      %s24 = sphi 0, %s22
      %s34 = sphi 0, %s36
      %s37 = sphi 0, %s34
      %s38 = sphi 0, %s37
      %s54 = sphi 0, %s38
      %s60 = sphi 0, %s62
      %s63 = sphi 0, %s60
      %s64 = sphi 0, %s63
      %s80 = sphi 0, %s64
      %s86 = sphi 0, %s88
      %s89 = sphi 0, %s86
      %s90 = sphi 0, %s89
      %s106 = sphi 0, %s90
      %s114 = sphi 0, %s116
      %s117 = sphi 0, %s114
      %s118 = sphi 0, %s117
      %s134 = sphi 0, %s118
    $region4: #{tpu_custom_call.1} parent=1 // loop_header_branch
      %15 = sbr.rel (%p13) target = $region8
    $region5: #{tpu_custom_call.1} parent=1 // loop_body
      %s17 = ssub.s32 %s12, 1
      %s18 = ssub.s32 %s12, 2
      %s25 = sadd.s32 1, %s20
      %p26 = scmp.ge.s32.totalorder %s25, 2
      %s27 = scalar_select %p26, 0, %s25
      %s28 = sadd.s32 1, %s19
      %s29 = scalar_select %p26, %s28, %s19
      %p30 = scmp.ge.s32.totalorder %s29, 4
      %s31 = scalar_select %p30, 0, %s29
      %s32 = ssub.s32 %s19, %s31
      %p33 = scmp.eq.s32.totalorder %s32, 0
      %s35 = sadd.s32 %s34, 1
      %s36 = scalar_select %p33, %s34, %s35
      %p39 = pneg %p33
      %p40 = scmp.eq.s32.totalorder %s12, 7
      %p41 = por %p39, %p40
      %p42 = scmp.ne.s32.totalorder %s34, %s37
      %p43 = scmp.eq.s32.totalorder %s12, 0
      %p44 = por %p42, %p43
      %p45 = scmp.ne.s32.totalorder %s34, %s37
      %p46 = scmp.eq.s32.totalorder %s17, 7
      %p47 = por %p45, %p46
      %p48 = scmp.ne.s32.totalorder %s37, %s38
      %p49 = scmp.eq.s32.totalorder %s17, 0
      %p50 = por %p48, %p49
      %p51 = scmp.ne.s32.totalorder %s37, %s38
      %p52 = scmp.eq.s32.totalorder %s18, 7
      %p53 = por %p51, %p52
      %p55 = scmp.ne.s32.totalorder %s38, %s54
      %p56 = scmp.eq.s32.totalorder %s18, 0
      %p57 = por %p55, %p56
      %s58 = ssub.s32 %s20, %s27
      %p59 = scmp.eq.s32.totalorder %s58, 0
      %s61 = sadd.s32 %s60, 1
      %s62 = scalar_select %p59, %s60, %s61
      %p65 = pneg %p59
      %p66 = scmp.eq.s32.totalorder %s12, 7
      %p67 = por %p65, %p66
      %p68 = scmp.ne.s32.totalorder %s60, %s63
      %p69 = scmp.eq.s32.totalorder %s12, 0
      %p70 = por %p68, %p69
      %p71 = scmp.ne.s32.totalorder %s60, %s63
      %p72 = scmp.eq.s32.totalorder %s17, 7
      %p73 = por %p71, %p72
      %p74 = scmp.ne.s32.totalorder %s63, %s64
      %p75 = scmp.eq.s32.totalorder %s17, 0
      %p76 = por %p74, %p75
      %p77 = scmp.ne.s32.totalorder %s63, %s64
      %p78 = scmp.eq.s32.totalorder %s18, 7
      %p79 = por %p77, %p78
      %p81 = scmp.ne.s32.totalorder %s64, %s80
      %p82 = scmp.eq.s32.totalorder %s18, 0
      %p83 = por %p81, %p82
      %s84 = ssub.s32 %s20, %s27
      %p85 = scmp.eq.s32.totalorder %s84, 0
      %s87 = sadd.s32 %s86, 1
      %s88 = scalar_select %p85, %s86, %s87
      %p91 = pneg %p85
      %p92 = scmp.eq.s32.totalorder %s12, 7
      %p93 = por %p91, %p92
      %p94 = scmp.ne.s32.totalorder %s86, %s89
      %p95 = scmp.eq.s32.totalorder %s12, 0
      %p96 = por %p94, %p95
      %p97 = scmp.ne.s32.totalorder %s86, %s89
      %p98 = scmp.eq.s32.totalorder %s17, 7
      %p99 = por %p97, %p98
      %p100 = scmp.ne.s32.totalorder %s89, %s90
      %p101 = scmp.eq.s32.totalorder %s17, 0
      %p102 = por %p100, %p101
      %p103 = scmp.ne.s32.totalorder %s89, %s90
      %p104 = scmp.eq.s32.totalorder %s18, 7
      %p105 = por %p103, %p104
      %p107 = scmp.ne.s32.totalorder %s90, %s106
      %p108 = scmp.eq.s32.totalorder %s18, 0
      %p109 = por %p107, %p108
      %s110 = ssub.s32 %s19, %s31
      %s111 = ssub.s32 %s20, %s27
      %s112 = sor.u32 %s110, %s111
      %p113 = scmp.eq.s32.totalorder %s112, 0
      %s115 = sadd.s32 %s114, 1
      %s116 = scalar_select %p113, %s114, %s115
      %p119 = pneg %p113
      %p120 = scmp.eq.s32.totalorder %s12, 7
      %p121 = por %p119, %p120
      %p122 = scmp.ne.s32.totalorder %s114, %s117
      %p123 = scmp.eq.s32.totalorder %s12, 0
      %p124 = por %p122, %p123
      %p125 = scmp.ne.s32.totalorder %s114, %s117
      %p126 = scmp.eq.s32.totalorder %s17, 7
      %p127 = por %p125, %p126
      %p128 = scmp.ne.s32.totalorder %s117, %s118
      %p129 = scmp.eq.s32.totalorder %s17, 0
      %p130 = por %p128, %p129
      %p131 = scmp.ne.s32.totalorder %s117, %s118
      %p132 = scmp.eq.s32.totalorder %s18, 7
      %p133 = por %p131, %p132
      %p135 = scmp.ne.s32.totalorder %s118, %s134
      %p136 = scmp.eq.s32.totalorder %s18, 0
      %p137 = por %p135, %p136
      %p138 = scmp.le.s32.totalorder 1, %s12
      %p139 = scmp.lt.s32.totalorder %s12, 9
      %p140 = pnand %p138, %p139
      %p141 = pneg %p140
      // Predicated region
      $region9: #{tpu_custom_call.1} parent=5 // pred_check
        _
      $region10: #{tpu_custom_call.1} parent=5 // pred_check_branch
        %143 = sbr.rel (%p140) target = $region12
      $region11: #{tpu_custom_call.1} parent=5 // pred_region
        %s144 = ssub.s32 %s12, 1
      $region12: #{tpu_custom_call.1} parent=5 // pred_fallthru
        _
      %p145 = scmp.lt.s32.totalorder %s12, 8
      // Predicated region
      $region13: #{tpu_custom_call.1} parent=5 // pred_check
        %p146 = pneg %p145
      $region14: #{tpu_custom_call.1} parent=5 // pred_check_branch
        %148 = sbr.rel (%p146) target = $region16
      $region15: #{tpu_custom_call.1} parent=5 // pred_region
        // Predicated region
        $region17: #{tpu_custom_call.1} parent=15 // pred_check
          %p149 = pneg %p44
        $region18: #{tpu_custom_call.1} parent=15 // pred_check_branch
          %151 = sbr.rel (%p149) target = $region20
        $region19: #{tpu_custom_call.1} parent=15 // pred_region
          %s152 = smul.u32 2, %s19
          %p153 = scmp.lt.s32.totalorder %s152, 7
          %s154 = scalar_select %p153, %s152, 7
          %s155 = smul.addr %s154, 4
          %s156 = scalar_lea.vmem %s0, %s155
          %s157 = smul.u32 2, %s19
        $region20: #{tpu_custom_call.1} parent=15 // pred_fallthru
          _
        // Predicated region
        $region21: #{tpu_custom_call.1} parent=15 // pred_check
          %p158 = pneg %p70
        $region22: #{tpu_custom_call.1} parent=15 // pred_check_branch
          %160 = sbr.rel (%p158) target = $region24
        $region23: #{tpu_custom_call.1} parent=15 // pred_region
          %s161 = sand.u32 %s60, 1
          %s162 = sand.u32 %s60, 1
          %s163 = smul.addr %s162, 16
          %s164 = scalar_lea.vmem [#allocation2], %s163
          %s165 = smul.addr %s20, 4
          %s166 = scalar_lea.vmem %s1, %s165
          // Predicated region
          $region25: #{tpu_custom_call.1} parent=23 // pred_check
            _
          $region26: #{tpu_custom_call.1} parent=23 // pred_check_branch
            %168 = sbr.rel (0) target = $region28
          $region27: #{tpu_custom_call.1} parent=23 // pred_region
            // Predicated region
            $region29: #{tpu_custom_call.1} parent=27 // pred_check
              _
            $region30: #{tpu_custom_call.1} parent=27 // pred_check_branch
              %170 = sbr.rel target = $region32
            $region31: #{tpu_custom_call.1} parent=27 // pred_region
              // Predicated region
              $region44: #{tpu_custom_call.1} parent=31 // pred_check
                _
              $region45: #{tpu_custom_call.1} parent=31 // pred_check_branch
                %191 = sbr.rel (0) target = $region47
              $region46: #{tpu_custom_call.1} parent=31 // pred_region
                loop: start=0, step=1, limit=1
                $region48: #{tpu_custom_call.1} parent=46 // loop_pre_header
                  _
                $region49: #{tpu_custom_call.1} parent=46 // loop_header
                  %s193 = sphi 0, %s197
                  %p194 = scmp.ge.s32.totalorder %s193, 1
                  %s198 = sphi %s166, %s166
                  %s199 = sphi %s164, %s164
                $region50: #{tpu_custom_call.1} parent=46 // loop_header_branch
                  %196 = sbr.rel (%p194) target = $region54
                $region51: #{tpu_custom_call.1} parent=46 // loop_body
                  _
                $region52: #{tpu_custom_call.1} parent=46 // loop_footer
                  %s197 = sadd.s32 1, %s193
                $region53: #{tpu_custom_call.1} parent=46 // loop_footer_branch
                  %192 = sbr.rel target = $region49
                $region54: #{tpu_custom_call.1} parent=46 // loop_exit
                  _
                loop: start=0, step=1, limit=1
                $region55: #{tpu_custom_call.1} parent=46 // loop_pre_header
                  _
                $region56: #{tpu_custom_call.1} parent=46 // loop_header
                  %s202 = sphi 0, %s206
                  %p203 = scmp.ge.s32.totalorder %s202, 1
                  %s207 = sphi %s166, %s166
                  %s208 = sphi %s164, %s164
                $region57: #{tpu_custom_call.1} parent=46 // loop_header_branch
                  %205 = sbr.rel (%p203) target = $region61
                $region58: #{tpu_custom_call.1} parent=46 // loop_body
                  %v209 = vld [vmem:[%s207] sm:$0xf]
                  %210 = vst [vmem:[%s208] sm:$0xf] %v209
                  %v211 = vld [vmem:[%s207 + $0x8] sm:$0xf]
                  %212 = vst [vmem:[%s208 + $0x4] sm:$0xf] %v211
                  %v213 = vld [vmem:[%s207 + $0x10] sm:$0xf]
                  %214 = vst [vmem:[%s208 + $0x8] sm:$0xf] %v213
                  %v215 = vld [vmem:[%s207 + $0x18] sm:$0xf]
                  %216 = vst [vmem:[%s208 + $0xc] sm:$0xf] %v215
                $region59: #{tpu_custom_call.1} parent=46 // loop_footer
                  %s206 = sadd.s32 1, %s202
                $region60: #{tpu_custom_call.1} parent=46 // loop_footer_branch
                  %201 = sbr.rel target = $region56
                $region61: #{tpu_custom_call.1} parent=46 // loop_exit
                  _
              $region47: #{tpu_custom_call.1} parent=31 // pred_fallthru
                _
            $region32: #{tpu_custom_call.1} parent=27 // pred_fallthru
              _
            // Predicated region
            $region33: #{tpu_custom_call.1} parent=27 // pred_check
              _
            $region34: #{tpu_custom_call.1} parent=27 // pred_check_branch
              %172 = sbr.rel (0) target = $region36
            $region35: #{tpu_custom_call.1} parent=27 // pred_region
              loop: start=0, step=1, limit=1
              $region37: #{tpu_custom_call.1} parent=35 // loop_pre_header
                _
              $region38: #{tpu_custom_call.1} parent=35 // loop_header
                %s175 = sphi 0, %s179
                %p176 = scmp.ge.s32.totalorder %s175, 1
                %s180 = sphi %s166, %s166
                %s181 = sphi %s164, %s164
              $region39: #{tpu_custom_call.1} parent=35 // loop_header_branch
                %178 = sbr.rel (%p176) target = $region43
              $region40: #{tpu_custom_call.1} parent=35 // loop_body
                %v182 = vld [vmem:[%s180] sm:$0xf]
                %183 = vst [vmem:[%s181] sm:$0xf] %v182
                %v184 = vld [vmem:[%s180 + $0x8] sm:$0xf]
                %185 = vst [vmem:[%s181 + $0x4] sm:$0xf] %v184
                %v186 = vld [vmem:[%s180 + $0x10] sm:$0xf]
                %187 = vst [vmem:[%s181 + $0x8] sm:$0xf] %v186
                %v188 = vld [vmem:[%s180 + $0x18] sm:$0xf]
                %189 = vst [vmem:[%s181 + $0xc] sm:$0xf] %v188
              $region41: #{tpu_custom_call.1} parent=35 // loop_footer
                %s179 = sadd.s32 1, %s175
              $region42: #{tpu_custom_call.1} parent=35 // loop_footer_branch
                %174 = sbr.rel target = $region38
              $region43: #{tpu_custom_call.1} parent=35 // loop_exit
                _
            $region36: #{tpu_custom_call.1} parent=27 // pred_fallthru
              _
          $region28: #{tpu_custom_call.1} parent=23 // pred_fallthru
            _
          %217 = vnop
        $region24: #{tpu_custom_call.1} parent=15 // pred_fallthru
          _
        // Predicated region
        $region62: #{tpu_custom_call.1} parent=15 // pred_check
          %p218 = pneg %p96
        $region63: #{tpu_custom_call.1} parent=15 // pred_check_branch
          %220 = sbr.rel (%p218) target = $region65
        $region64: #{tpu_custom_call.1} parent=15 // pred_region
          %p221 = scmp.lt.s32.totalorder %s20, 1
          %s222 = scalar_select %p221, %s20, 1
          %s223 = scalar_lea.vmem %s2, %s222
        $region65: #{tpu_custom_call.1} parent=15 // pred_fallthru
          _
      $region16: #{tpu_custom_call.1} parent=5 // pred_fallthru
        _
      %p224 = scmp.le.s32.totalorder 1, %s12
      %p225 = scmp.lt.s32.totalorder %s12, 9
      %p226 = pnand %p224, %p225
      %p227 = pneg %p226
      // Predicated region
      $region66: #{tpu_custom_call.1} parent=5 // pred_check
        _
      $region67: #{tpu_custom_call.1} parent=5 // pred_check_branch
        %229 = sbr.rel (%p226) target = $region69
      $region68: #{tpu_custom_call.1} parent=5 // pred_region
        %s230 = ssub.s32 %s12, 1
        %s231 = sand.u32 %s63, 1
        %s232 = sand.u32 %s63, 1
        %s233 = smul.addr %s232, 16
        %s234 = scalar_lea.vmem [#allocation2], %s233
        // Predicated region
        $region70: #{tpu_custom_call.1} parent=68 // pred_check
          %p235 = pneg %p76
        $region71: #{tpu_custom_call.1} parent=68 // pred_check_branch
          %237 = sbr.rel (%p235) target = $region73
        $region72: #{tpu_custom_call.1} parent=68 // pred_region
          _
        $region73: #{tpu_custom_call.1} parent=68 // pred_fallthru
          _
        %s238 = smul.u32 2, %s21
        %p239 = scmp.lt.s32.totalorder %s238, 7
        %s240 = scalar_select %p239, %s238, 7
        %s241 = smul.addr %s240, 4
        %s242 = scalar_lea.vmem %s0, %s241
        %p243 = pneg %p50
        %p244 = pneg %p47
        %s245 = sand.u32 %s63, 1
        %s246 = sand.u32 %s63, 1
        %s247 = smul.addr %s246, 16
        %s248 = scalar_lea.vmem [#allocation2], %s247
        %p249 = pneg %p76
        %p250 = pneg %p73
        %p251 = scmp.lt.s32.totalorder %s22, 1
        %s252 = scalar_select %p251, %s22, 1
        %s253 = scalar_lea.vmem %s2, %s252
        %p254 = pneg %p102
        %p255 = pneg %p99
        %p256 = pneg %p130
        %p257 = pneg %p127
        %s258 = sand.u32 %s117, 1
        %s259 = scalar_lea.sflag [#allocation4], %s258
        %s260 = sand.u32 %s117, 1
        %s261 = smul.addr %s260, 8
        %s262 = scalar_lea.vmem [#allocation3], %s261
        %s263 = smul.u32 2, %s21
        %p264 = scmp.lt.s32.totalorder %s263, 7
        %s265 = scalar_select %p264, %s263, 7
        %s266 = smul.addr %s265, 4
        %s267 = scalar_lea.vmem %s0, %s266
        %s268 = smul.u32 2, %s21
        %p269 = scmp.lt.s32.totalorder %s22, 1
        %s270 = scalar_select %p269, %s22, 1
        %s271 = scalar_lea.vmem %s2, %s270
        %s272 = smul.u32 2, %s21
        %v274 = vld [vmem:[%s267] sm:$0xf]
        %v275 = vld [vmem:[%s267 + $0x4] sm:$0xf]
        %v276 = vld [vmem:[%s234] sm:$0xf]
        %v277 = vld [vmem:[%s234 + $0x4] sm:$0xf]
        %v278 = vld [vmem:[%s234 + $0x8] sm:$0xf]
        %v279 = vld [vmem:[%s234 + $0xc] sm:$0xf]
        %v280 = vld [vmem:[%s271] sm:$0x1]
        %v282 = vlaneseq
        %v283 = vshrl.u32 %v282, 7
        %v284 = vsub.s32 0, %v283
        %v285 = vrot.slane %v280, %v284
        %v289 = vunpack.c.l.b16 %v274
        %v290 = vunpack.c.l.b16 %v275
        %v291 = vpack.c.b16 %v290, %v289
        %v296 = vunpack.c.l.b16 %v276
        %v297 = vunpack.c.l.b16 %v277
        %v298 = vunpack.c.l.b16 %v278
        %v299 = vunpack.c.l.b16 %v279
        %v300 = vpack.c.b16 %v297, %v296
        %v301 = vpack.c.b16 %v299, %v298
        %vm304 = vcmask 261120
        %v306 = vsel %vm304, %v291, 0
        %308 = vmatprep.subr.bf16.mxu0 0
        %309 = vmatpush1.bf16.msra.mxu0 %v300
        %310 = vmatprep.subr.bf16.mxu0 0
        %311 = vmatpush1.bf16.msra.mxu0 %v301
        %312 = vmatprep.subr.bf16.mxu0 0
        %313 = vmatpush1.bf16.msra.mxu0 0
        %314 = vmatprep.subr.bf16.mxu0 0
        %315 = vmatpush1.bf16.msra.mxu0 0
        %316 = vmatprep.subr.bf16.mxu0 0
        %317 = vmatpush1.bf16.msra.mxu0 0
        %318 = vmatprep.subr.bf16.mxu0 0
        %319 = vmatpush1.bf16.msra.mxu0 0
        %320 = vmatprep.subr.bf16.mxu0 0
        %321 = vmatpush1.bf16.msra.mxu0 0
        %322 = vmatprep.subr.bf16.mxu0 0
        %323 = vmatpush1.bf16.msra.mxu0 0
        %324 = vmatprep.subr.bf16.mxu0 0
        %325 = vmatpush1.bf16.msra.mxu0 0
        %326 = vmatprep.subr.bf16.mxu0 0
        %327 = vmatpush1.bf16.msra.mxu0 0
        %328 = vmatprep.subr.bf16.mxu0 0
        %329 = vmatpush1.bf16.msra.mxu0 0
        %330 = vmatprep.subr.bf16.mxu0 0
        %331 = vmatpush1.bf16.msra.mxu0 0
        %332 = vmatprep.subr.bf16.mxu0 0
        %333 = vmatpush1.bf16.msra.mxu0 0
        %334 = vmatprep.subr.bf16.mxu0 0
        %335 = vmatpush1.bf16.msra.mxu0 0
        %336 = vmatprep.subr.bf16.mxu0 0
        %337 = vmatpush1.bf16.msra.mxu0 0
        %338 = vmatprep.subr.bf16.mxu0 0
        %339 = vmatpush1.bf16.msra.mxu0 0
        %340 = vmatprep.mubr.bf16.mxu0 0
        %341 = vmatmul.mubr.bf16.gmra.mrb[0].mxu0 %v306
        %v342 = vpop.f32.mrb[0].mxu0
        %v343 = vadd.f32 %v285, %v342
        %v344 = vpop.f32.mrb[0].mxu0
        %v345 = vpop.f32.mrb[0].mxu0
        %v346 = vadd.f32 %v285, %v345
        %v347 = vpop.f32.mrb[0].mxu0
        %348 = vdwg.mxu0
        %v349 = vpack.c.bf16 %v346, %v343
        %v351 = vunpack.c.l.b16 %v349
        %v352 = vunpack.c.h.b16 %v349
        %v353 = vpack.c.b16 %v351, %v351
        %v354 = vpack.c.b16 %v352, %v352
        %357 = vst [vmem:[%s262] sm:$0xf] %v353
        %358 = vst [vmem:[%s262 + $0x4] sm:$0xf] %v354
        %s359 = sand.u32 %s117, 1
        %s360 = scalar_lea.sflag [#allocation4], %s359
        %s361 = sand.u32 %s117, 1
        %s362 = smul.addr %s361, 8
        %s363 = scalar_lea.vmem [#allocation3], %s362
        // Predicated region
        $region74: #{tpu_custom_call.1} parent=68 // pred_check
          %p364 = pneg %p127
        $region75: #{tpu_custom_call.1} parent=68 // pred_check_branch
          %366 = sbr.rel (%p364) target = $region77
        $region76: #{tpu_custom_call.1} parent=68 // pred_region
          %s367 = smul.u32 2, %s21
          %s369 = ssub.s32 128, 128
          %370 = vsyncadd %s360, %s369
          %s371 = smul.addr %s367, 2
          %s372 = sadd.s32 %s22, %s371
          %s373 = smul.addr %s372, 64
          %s374 = scalar_lea.hbm %s3, %s373
          %s375 = sshll.u32 %s363, 4
          %s376 = int_to_ptr.vmem [resolvable:$true] %s375
          %381 = dma.vmem_to_hbm [thread:$0]  %s376, 128, %s374, %s360, 64, 128, 4
        $region77: #{tpu_custom_call.1} parent=68 // pred_fallthru
          _
      $region69: #{tpu_custom_call.1} parent=5 // pred_fallthru
        _
      %p382 = scmp.le.s32.totalorder 2, %s12
      // Predicated region
      $region78: #{tpu_custom_call.1} parent=5 // pred_check
        %p383 = pneg %p382
      $region79: #{tpu_custom_call.1} parent=5 // pred_check_branch
        %385 = sbr.rel (%p383) target = $region81
      $region80: #{tpu_custom_call.1} parent=5 // pred_region
        %s386 = ssub.s32 %s12, 2
        // Predicated region
        $region82: #{tpu_custom_call.1} parent=80 // pred_check
          %p387 = pneg %p133
        $region83: #{tpu_custom_call.1} parent=80 // pred_check_branch
          %389 = sbr.rel (%p387) target = $region85
        $region84: #{tpu_custom_call.1} parent=80 // pred_region
          %s390 = sand.u32 %s118, 1
          %s391 = scalar_lea.sflag [#allocation4], %s390
          %s392 = sand.u32 %s118, 1
          %s393 = smul.addr %s392, 8
          %s394 = scalar_lea.vmem [#allocation3], %s393
          %395 = dma.done %s391, 128
        $region85: #{tpu_custom_call.1} parent=80 // pred_fallthru
          _
      $region81: #{tpu_custom_call.1} parent=5 // pred_fallthru
        _
    $region6: #{tpu_custom_call.1} parent=1 // loop_footer
      %s16 = sadd.s32 1, %s12
    $region7: #{tpu_custom_call.1} parent=1 // loop_footer_branch
      %11 = sbr.rel target = $region3
    $region8: #{tpu_custom_call.1} parent=1 // loop_exit
      _
    %396 = vsyncpa [#allocation4], 1
    %s397 = scalar_lea.sflag [#allocation4], 1
    %398 = vsyncpa %s397, 1

</llo_original>
